<compile_context>
chip_gen: v7x
topology: tpu7x:2x2x1
jax: 0.10.0
libtpu: 0.0.40
codegen_flags: <defaults>
</compile_context>

<pallas_src>
import functools

import jax
import jax.numpy as jnp
from jax.experimental import pallas as pl
from jax.experimental.pallas import tpu as pltpu


def _cdiv(a, b):
    return -(-a // b)


def _round_up(a, b):
    return _cdiv(a, b) * b


def _largest_divisor_leq(n, cap):
    """Largest divisor of n that is <= cap (cap >= 1)."""
    cap = max(1, min(n, cap))
    best = 1
    i = 1
    while i * i <= n:
        if n % i == 0:
            for d in (i, n // i):
                if d <= cap and d > best:
                    best = d
        i += 1
    return best


def _tpu_vmem_params():
    """(vmem_limit_bytes or None, compute budget bytes, two_tensorcores)."""
    kind = ""
    try:
        kind = jax.devices()[0].device_kind.lower()
    except Exception:
        pass
    if "v7" in kind:
        # 64 MiB physical VMEM per TensorCore, 2 TensorCores per chip.
        return 48 * 1024 * 1024, 20 * 1024 * 1024, True
    if "v5" in kind or "v6" in kind:
        # 128 MiB physical VMEM, single TensorCore.
        return 96 * 1024 * 1024, 48 * 1024 * 1024, False
    # Unknown generation: keep actual usage inside the default scoped limit.
    return None, 10 * 1024 * 1024, False


def _tv_kernel(x_ref, out_ref, acc_h_ref, acc_w_ref, *, bc, tbc,
               blocks_per_split, needs_mask):
    # x_ref block: (TBC, H, W) channel-planes.
    i = pl.program_id(1)
    nsteps = pl.num_programs(1)

    @pl.when(i == 0)
    def _():
        acc_h_ref[...] = jnp.zeros_like(acc_h_ref)
        acc_w_ref[...] = jnp.zeros_like(acc_w_ref)

    x = x_ref[...]
    if needs_mask:
        # Zero out planes beyond the real plane count (partial last block or
        # clamped phantom blocks).  Statically skipped when coverage is exact.
        s = pl.program_id(0)
        plane_base = (s * blocks_per_split + i) * tbc
        plane_idx = plane_base + jax.lax.broadcasted_iota(
            jnp.int32, (tbc, 1, 1), 0)
        x = jnp.where(plane_idx < bc, x, jnp.zeros((), x.dtype))

    # Diffs in the input dtype (bf16-native VALU on v6e/v7x); square and
    # accumulate in f32.
    dh = (x[:, 1:, :] - x[:, :-1, :]).astype(jnp.float32)   # (TBC, H-1, W)
    dw = (x[:, :, 1:] - x[:, :, :-1]).astype(jnp.float32)   # (TBC, H, W-1)

    # Reduce plane + sublane axes per step into lane-width accumulators; the
    # only full cross-lane reduce happens once, at the last step.
    h_part = jnp.sum(jnp.sum(dh * dh, axis=0), axis=0, keepdims=True)  # (1, W)
    w_part = jnp.sum(jnp.sum(dw * dw, axis=0), axis=0, keepdims=True)  # (1, W-1)
    acc_h_ref[...] += h_part
    acc_w_ref[...] += w_part

    @pl.when(i == nsteps - 1)
    def _():
        h_tv = jnp.sum(acc_h_ref[...])
        w_tv = jnp.sum(acc_w_ref[...])
        lane = jax.lax.broadcasted_iota(jnp.int32, (1, 8, 128), 2)
        out_ref[...] = (jnp.where(lane == 0, h_tv, 0.0)
                        + jnp.where(lane == 1, w_tv, 0.0))


@functools.partial(jax.jit, static_argnames=("tv_loss_weight",))
def tv_loss(x, tv_loss_weight=0.01):
    """Total-variation loss matching PyTorch TVLoss.forward.

    x: (B, C, H, W) array (f32 or bf16). Returns a scalar float32.
    """
    b, c, h, w = x.shape
    if h < 2 or w < 2:
        # Degenerate spatial dims (PyTorch divides by zero here); plain-JAX
        # path reproduces the same math rather than lowering zero-size blocks.
        h_tv = jnp.sum((x[:, :, 1:, :] - x[:, :, :-1, :]).astype(jnp.float32) ** 2)
        w_tv = jnp.sum((x[:, :, :, 1:] - x[:, :, :, :-1]).astype(jnp.float32) ** 2)
        count_h = c * (h - 1) * w
        count_w = c * h * (w - 1)
        return (tv_loss_weight * 2.0 * (h_tv / count_h + w_tv / count_w)
                / b).astype(jnp.float32)

    bc = b * c
    x_flat = x.reshape(bc, h, w)

    vmem_limit, compute_budget, two_cores = _tpu_vmem_params()

    # Per-plane VMEM cost including (8,128) tile padding of the minor dims and
    # the in-kernel temporaries: 2x pipelined input + ~4 native-dtype temps
    # (masked copy, shifted slices, diffs) + ~4 f32 temps (casts, squares).
    itemsize = x.dtype.itemsize
    sublane = 8 * max(1, 4 // itemsize)            # 8 for f32, 16 for bf16
    plane_native = _round_up(h, sublane) * _round_up(w, 128) * itemsize
    plane_f32 = _round_up(h, 8) * _round_up(w, 128) * 4
    per_plane = (2 + 4) * plane_native + 4 * plane_f32
    tbc_max = max(1, min(bc, compute_budget // per_plane))

    # Prefer an exact divisor of bc (no host pad, no in-kernel masking);
    # fall back to tbc_max + masking only if divisors are too small.
    tbc = _largest_divisor_leq(bc, tbc_max)
    if tbc * 2 < tbc_max:
        tbc = tbc_max
    num_blocks = _cdiv(bc, tbc)

    # On dual-TensorCore chips make sure the "parallel" axis feeds both cores.
    if two_cores and num_blocks < 2 and tbc > 1:
        tbc = _cdiv(tbc, 2)
        num_blocks = _cdiv(bc, tbc)
    nsplit = 2 if (two_cores and num_blocks >= 2) else 1
    blocks_per_split = _cdiv(num_blocks, nsplit)
    needs_mask = (nsplit * blocks_per_split * tbc) != bc

    kernel = functools.partial(
        _tv_kernel, bc=bc, tbc=tbc, blocks_per_split=blocks_per_split,
        needs_mask=needs_mask)

    def in_index_map(s, i):
        # Clamp phantom trailing blocks (when nsplit doesn't divide the block
        # count); their planes are zero-masked inside the kernel.
        return (jnp.minimum(s * blocks_per_split + i, num_blocks - 1), 0, 0)

    cp_kwargs = dict(dimension_semantics=("parallel", "arbitrary"))
    if vmem_limit is not None:
        cp_kwargs["vmem_limit_bytes"] = vmem_limit

    out = pl.pallas_call(
        kernel,
        out_shape=jax.ShapeDtypeStruct((nsplit, 8, 128), jnp.float32),
        grid_spec=pltpu.PrefetchScalarGridSpec(
            num_scalar_prefetch=0,
            grid=(nsplit, blocks_per_split),
            in_specs=[pl.BlockSpec((tbc, h, w), in_index_map)],
            out_specs=pl.BlockSpec((1, 8, 128), lambda s, i: (s, 0, 0)),
            scratch_shapes=[
                pltpu.VMEM((1, w), jnp.float32),       # per-lane height-diff sums
                pltpu.VMEM((1, w - 1), jnp.float32),   # per-lane width-diff sums
            ],
        ),
        compiler_params=pltpu.CompilerParams(**cp_kwargs),
        cost_estimate=pl.CostEstimate(
            flops=6 * bc * h * w,
            transcendentals=0,
            bytes_accessed=int(x.nbytes) + nsplit * 8 * 128 * 4,
        ),
    )(x_flat)

    h_tv = jnp.sum(out[:, 0, 0])
    w_tv = jnp.sum(out[:, 0, 1])

    count_h = c * (h - 1) * w     # tensor_size(x[:, :, 1:, :])
    count_w = c * h * (w - 1)     # tensor_size(x[:, :, :, 1:])

    return (tv_loss_weight * 2.0 * (h_tv / count_h + w_tv / count_w)
            / b).astype(jnp.float32)


if __name__ == "__main__":
    key = jax.random.PRNGKey(0)
    x = jax.random.normal(key, (2, 4, 16, 16), dtype=jnp.float32)

    out = tv_loss(x, tv_loss_weight=0.01)
    jax.block_until_ready(out)

    # Pure-JAX reference check (same math, no Pallas).
    h_tv_ref = jnp.sum((x[:, :, 1:, :] - x[:, :, :-1, :]) ** 2)
    w_tv_ref = jnp.sum((x[:, :, :, 1:] - x[:, :, :, :-1]) ** 2)
    count_h = x.shape[1] * (x.shape[2] - 1) * x.shape[3]
    count_w = x.shape[1] * x.shape[2] * (x.shape[3] - 1)
    ref = 0.01 * 2.0 * (h_tv_ref / count_h + w_tv_ref / count_w) / x.shape[0]

    assert jnp.allclose(out, ref, rtol=1e-5, atol=1e-6), (out, ref)
    print("KERNEL_OK")
</pallas_src>

<mosaic_0001>
module attributes {stable_mosaic.version = 11 : i64} {
  func.func @_tv_kernel(%arg0: i32, %arg1: i32, %arg2: memref<8x16x16xf32, #tpu.memory_space<vmem>>, %arg3: memref<1x8x128xf32, #tpu.memory_space<vmem>>, %arg4: memref<1x16xf32, #tpu.memory_space<vmem>>, %arg5: memref<1x15xf32, #tpu.memory_space<vmem>>) attributes {dimension_semantics = [#tpu.dimension_semantics<parallel>, #tpu.dimension_semantics<arbitrary>], iteration_bounds = array<i64: 1, 1>, scalar_prefetch = 0 : i64, scratch_operands = 2 : i64, tpu.core_type = #tpu.core_type<tc>, window_params = [{transform_indices = @transform_0, window_bounds = array<i64: 8, 16, 16>}, {transform_indices = @transform_1, window_bounds = array<i64: 1, 8, 128>}]} {
    %c0_i32 = arith.constant 0 : i32
    %0 = arith.cmpi eq, %arg1, %c0_i32 : i32
    %1 = arith.extui %0 : i1 to i32
    %c0_i32_0 = arith.constant 0 : i32
    %2 = arith.cmpi ne, %1, %c0_i32_0 : i32
    scf.if %2 {
      %cst_16 = arith.constant 0.000000e+00 : f32
      %27 = vector.broadcast %cst_16 : f32 to vector<1x16xf32>
      %c0_17 = arith.constant 0 : index
      %c0_18 = arith.constant 0 : index
      %28 = vector.load %arg4[%c0_17, %c0_18] : memref<1x16xf32, #tpu.memory_space<vmem>>, vector<1x16xf32>
      tpu.vector_store %arg4[%c0_17, %c0_18], %27 {strides = array<i32>} : memref<1x16xf32, #tpu.memory_space<vmem>>, vector<1x16xf32>,
      %cst_19 = arith.constant 0.000000e+00 : f32
      %29 = vector.broadcast %cst_19 : f32 to vector<1x15xf32>
      %c0_20 = arith.constant 0 : index
      %c0_21 = arith.constant 0 : index
      %30 = vector.load %arg5[%c0_20, %c0_21] : memref<1x15xf32, #tpu.memory_space<vmem>>, vector<1x15xf32>
      tpu.vector_store %arg5[%c0_20, %c0_21], %29 {strides = array<i32>} : memref<1x15xf32, #tpu.memory_space<vmem>>, vector<1x15xf32>,
    } else {
    }
    %c0 = arith.constant 0 : index
    %c0_1 = arith.constant 0 : index
    %c0_2 = arith.constant 0 : index
    %3 = vector.load %arg2[%c0, %c0_1, %c0_2] : memref<8x16x16xf32, #tpu.memory_space<vmem>>, vector<8x16x16xf32>
    %4 = vector.extract_strided_slice %3 {offsets = [0, 1, 0], sizes = [8, 15, 16], strides = [1, 1, 1]} : vector<8x16x16xf32> to vector<8x15x16xf32>
    %5 = vector.extract_strided_slice %3 {offsets = [0, 0, 0], sizes = [8, 15, 16], strides = [1, 1, 1]} : vector<8x16x16xf32> to vector<8x15x16xf32>
    %6 = arith.subf %4, %5 : vector<8x15x16xf32>
    %7 = vector.extract_strided_slice %3 {offsets = [0, 0, 1], sizes = [8, 16, 15], strides = [1, 1, 1]} : vector<8x16x16xf32> to vector<8x16x15xf32>
    %8 = vector.extract_strided_slice %3 {offsets = [0, 0, 0], sizes = [8, 16, 15], strides = [1, 1, 1]} : vector<8x16x16xf32> to vector<8x16x15xf32>
    %9 = arith.subf %7, %8 : vector<8x16x15xf32>
    %10 = arith.mulf %6, %6 : vector<8x15x16xf32>
    %cst = arith.constant dense<0.000000e+00> : vector<15x16xf32>
    %11 = vector.multi_reduction <add>, %10, %cst [0] : vector<8x15x16xf32> to vector<15x16xf32>
    %cst_3 = arith.constant dense<0.000000e+00> : vector<16xf32>
    %12 = vector.multi_reduction <add>, %11, %cst_3 [0] : vector<15x16xf32> to vector<16xf32>
    %13 = vector.shape_cast %12 : vector<16xf32> to vector<1x16xf32>
    %14 = arith.mulf %9, %9 : vector<8x16x15xf32>
    %cst_4 = arith.constant dense<0.000000e+00> : vector<16x15xf32>
    %15 = vector.multi_reduction <add>, %14, %cst_4 [0] : vector<8x16x15xf32> to vector<16x15xf32>
    %cst_5 = arith.constant dense<0.000000e+00> : vector<15xf32>
    %16 = vector.multi_reduction <add>, %15, %cst_5 [0] : vector<16x15xf32> to vector<15xf32>
    %17 = vector.shape_cast %16 : vector<15xf32> to vector<1x15xf32>
    %c0_6 = arith.constant 0 : index
    %c0_7 = arith.constant 0 : index
    %18 = vector.load %arg4[%c0_6, %c0_7] : memref<1x16xf32, #tpu.memory_space<vmem>>, vector<1x16xf32>
    %19 = arith.addf %18, %13 : vector<1x16xf32>
    %c0_8 = arith.constant 0 : index
    %c0_9 = arith.constant 0 : index
    %20 = vector.load %arg4[%c0_8, %c0_9] : memref<1x16xf32, #tpu.memory_space<vmem>>, vector<1x16xf32>
    tpu.vector_store %arg4[%c0_8, %c0_9], %19 {strides = array<i32>} : memref<1x16xf32, #tpu.memory_space<vmem>>, vector<1x16xf32>,
    %c0_10 = arith.constant 0 : index
    %c0_11 = arith.constant 0 : index
    %21 = vector.load %arg5[%c0_10, %c0_11] : memref<1x15xf32, #tpu.memory_space<vmem>>, vector<1x15xf32>
    %22 = arith.addf %21, %17 : vector<1x15xf32>
    %c0_12 = arith.constant 0 : index
    %c0_13 = arith.constant 0 : index
    %23 = vector.load %arg5[%c0_12, %c0_13] : memref<1x15xf32, #tpu.memory_space<vmem>>, vector<1x15xf32>
    tpu.vector_store %arg5[%c0_12, %c0_13], %22 {strides = array<i32>} : memref<1x15xf32, #tpu.memory_space<vmem>>, vector<1x15xf32>,
    %c0_i32_14 = arith.constant 0 : i32
    %24 = arith.cmpi eq, %arg1, %c0_i32_14 : i32
    %25 = arith.extui %24 : i1 to i32
    %c0_i32_15 = arith.constant 0 : i32
    %26 = arith.cmpi ne, %25, %c0_i32_15 : i32
    scf.if %26 {
      %c0_16 = arith.constant 0 : index
      %c0_17 = arith.constant 0 : index
      %27 = vector.load %arg4[%c0_16, %c0_17] : memref<1x16xf32, #tpu.memory_space<vmem>>, vector<1x16xf32>
      %28 = vector.shape_cast %27 : vector<1x16xf32> to vector<1x1x16xf32>
      %cst_18 = arith.constant dense<0.000000e+00> : vector<1xf32>
      %29 = vector.multi_reduction <add>, %28, %cst_18 [1, 2] : vector<1x1x16xf32> to vector<1xf32>
      %30 = vector.shape_cast %29 : vector<1xf32> to vector<1x1x1xf32>
      %31 = vector.extract %30[0, 0, 0] : f32 from vector<1x1x1xf32>
      %c0_19 = arith.constant 0 : index
      %c0_20 = arith.constant 0 : index
      %32 = vector.load %arg5[%c0_19, %c0_20] : memref<1x15xf32, #tpu.memory_space<vmem>>, vector<1x15xf32>
      %33 = vector.shape_cast %32 : vector<1x15xf32> to vector<1x1x15xf32>
      %cst_21 = arith.constant dense<0.000000e+00> : vector<1xf32>
      %34 = vector.multi_reduction <add>, %33, %cst_21 [1, 2] : vector<1x1x15xf32> to vector<1xf32>
      %35 = vector.shape_cast %34 : vector<1xf32> to vector<1x1x1xf32>
      %36 = vector.extract %35[0, 0, 0] : f32 from vector<1x1x1xf32>
      %37 = tpu.iota {dimensions = array<i32: 2>} : vector<1x8x128xi32>
      %c0_i32_22 = arith.constant 0 : i32
      %38 = vector.broadcast %c0_i32_22 : i32 to vector<1x8x128xi32>
      %39 = arith.cmpi eq, %37, %38 : vector<1x8x128xi32>
      %cst_23 = arith.constant 0.000000e+00 : f32
      %40 = vector.broadcast %31 : f32 to vector<1x8x128xf32>
      %41 = vector.broadcast %cst_23 : f32 to vector<1x8x128xf32>
      %42 = arith.select %39, %40, %41 : vector<1x8x128xi1>, vector<1x8x128xf32>
      %c1_i32 = arith.constant 1 : i32
      %43 = vector.broadcast %c1_i32 : i32 to vector<1x8x128xi32>
      %44 = arith.cmpi eq, %37, %43 : vector<1x8x128xi32>
      %cst_24 = arith.constant 0.000000e+00 : f32
      %45 = vector.broadcast %36 : f32 to vector<1x8x128xf32>
      %46 = vector.broadcast %cst_24 : f32 to vector<1x8x128xf32>
      %47 = arith.select %44, %45, %46 : vector<1x8x128xi1>, vector<1x8x128xf32>
      %48 = arith.addf %42, %47 : vector<1x8x128xf32>
      %c0_25 = arith.constant 0 : index
      %c0_26 = arith.constant 0 : index
      %c0_27 = arith.constant 0 : index
      %49 = vector.load %arg3[%c0_25, %c0_26, %c0_27] : memref<1x8x128xf32, #tpu.memory_space<vmem>>, vector<1x8x128xf32>
      tpu.vector_store %arg3[%c0_25, %c0_26, %c0_27], %48 {strides = array<i32>} : memref<1x8x128xf32, #tpu.memory_space<vmem>>, vector<1x8x128xf32>,
    } else {
    }
    return
  }
  func.func @transform_0(%arg0: i32, %arg1: i32) -> (i32, i32, i32) {
    %c1_i32 = arith.constant 1 : i32
    %0 = arith.muli %arg0, %c1_i32 : i32
    %1 = arith.addi %0, %arg1 : i32
    %c0_i32 = arith.constant 0 : i32
    %2 = arith.minsi %1, %c0_i32 : i32
    %c0_i32_0 = arith.constant 0 : i32
    %c0_i32_1 = arith.constant 0 : i32
    %c0_i32_2 = arith.constant 0 : i32
    return %2, %c0_i32_0, %c0_i32_1 : i32, i32, i32
  }
  func.func @transform_1(%arg0: i32, %arg1: i32) -> (i32, i32, i32) {
    %c0_i32 = arith.constant 0 : i32
    %c0_i32_0 = arith.constant 0 : i32
    %c0_i32_1 = arith.constant 0 : i32
    return %arg0, %c0_i32, %c0_i32_0 : i32, i32, i32
  }
}

</mosaic_0001>

<llo_original>
// kernel: tv_loss.1
$region0: #{tv_loss.1}
  #allocation0 [shape = 'u32[]', space=smem, size = 0x4, offset = 0x4, fixed_abs, tag = 'smem constant byte address 0x4 - core index']
  #allocation1 [shape = 'u32[144,128]{1,0:T(1,128)}', space=vmem, size = 0x12000, scoped, tag = 'internal scratch']
  #allocation2 [shape = 'f32[1,16]{1,0:T(1,128)}', space=vmem, size = 0x200, scoped, tag = 'scratch operand']
  #allocation3 [shape = 'f32[1,15]{1,0:T(1,128)}', space=vmem, size = 0x200, scoped, tag = 'scratch operand']
  %s0 = inlined_call_operand.hbm [shape: f32[8,16,16], index: 0, kind: input, shape index: {}]
  %s1 = inlined_call_operand.vmem [shape: f32[1,8,128], index: 1, kind: output, shape index: {}]
  %s2 = sld [smem:[#allocation0]]
  $region26: #{tv_loss.1} parent=0
    _
  %s4 = ssub.s32 1, %s2
  %s5 = scalar_select 0, %s4, %s2
  $region1: #{tv_loss.1} parent=0
    #allocation4 [shape = 'u8[65536]{0}', space=vmem, size = 0x10000, scoped, tag = 'input window, operand 0, single buffered']
    #allocation5 [shape = 's32[1]{0}', space=sflag, size = 0x4, scoped, tag = 'scoped memory for tv_loss.1']
    %6 = vsyncpa [#allocation5], 0
    // Predicated region
    $region2: #{tv_loss.1} parent=1 // pred_check
      _
    $region3: #{tv_loss.1} parent=1 // pred_check_branch
      %8 = sbr.rel (0) target = $region5
    $region4: #{tv_loss.1} parent=1 // pred_region
      %s9 = sadd.s32 0, 0
      %p10 = scmp.lt.s32.totalorder %s9, 0
      %s11 = scalar_select %p10, %s9, 0
      %s12 = smul.u32 8, %s11
      %s14 = ssub.s32 2048, 2048
      %15 = vsyncadd [#allocation5], %s14
      %s16 = smul.addr %s12, 2
      %s17 = smul.addr %s16, 128
      %s18 = scalar_lea.hbm %s0, %s17
      %s19 = sshll.u32 [#allocation4], 4
      %s20 = int_to_ptr.vmem [resolvable:$true] %s19
      %25 = dma.hbm_to_vmem [thread:$0]  %s18, 2048, %s20, [#allocation5], 128, 128, 8
    $region5: #{tv_loss.1} parent=1 // pred_fallthru
      _
    // Predicated region
    $region6: #{tv_loss.1} parent=1 // pred_check
      _
    $region7: #{tv_loss.1} parent=1 // pred_check_branch
      %27 = sbr.rel (0) target = $region9
    $region8: #{tv_loss.1} parent=1 // pred_region
      %28 = dma.done [#allocation5], 2048
    $region9: #{tv_loss.1} parent=1 // pred_fallthru
      _
    %s29 = sadd.s32 0, 0
    %p30 = scmp.lt.s32.totalorder %s29, 0
    %s31 = scalar_select %p30, %s29, 0
    %s32 = smul.u32 8, %s31
    %p33 = scmp.eq.s32.totalorder 0, 0
    // Predicated region
    $region10: #{tv_loss.1} parent=1 // pred_check
      %p34 = pneg %p33
    $region11: #{tv_loss.1} parent=1 // pred_check_branch
      %36 = sbr.rel (%p34) target = $region13
    $region12: #{tv_loss.1} parent=1 // pred_region
      %vm37 = vcmask 122880
      %38 = vst.msk [vmem:[#allocation2] sm:$0x1] %vm37, 0.0
      %vm39 = vcmask 114688
      %40 = vst.msk [vmem:[#allocation3] sm:$0x1] %vm39, 0.0
    $region13: #{tv_loss.1} parent=1 // pred_fallthru
      _
    %v41 = vld [vmem:[#allocation4] sm:$0xff]
    %v42 = vld [vmem:[#allocation4 + $0x8] sm:$0xff]
    %v43 = vld [vmem:[#allocation4 + $0x10] sm:$0xff]
    %v44 = vld [vmem:[#allocation4 + $0x18] sm:$0xff]
    %v45 = vld [vmem:[#allocation4 + $0x20] sm:$0xff]
    %v46 = vld [vmem:[#allocation4 + $0x28] sm:$0xff]
    %v47 = vld [vmem:[#allocation4 + $0x30] sm:$0xff]
    %v48 = vld [vmem:[#allocation4 + $0x38] sm:$0xff]
    %v49 = vld [vmem:[#allocation4 + $0x40] sm:$0xff]
    %v50 = vld [vmem:[#allocation4 + $0x48] sm:$0xff]
    %v51 = vld [vmem:[#allocation4 + $0x50] sm:$0xff]
    %v52 = vld [vmem:[#allocation4 + $0x58] sm:$0xff]
    %v53 = vld [vmem:[#allocation4 + $0x60] sm:$0xff]
    %v54 = vld [vmem:[#allocation4 + $0x68] sm:$0xff]
    %v55 = vld [vmem:[#allocation4 + $0x70] sm:$0xff]
    %v56 = vld [vmem:[#allocation4 + $0x78] sm:$0xff]
    %vm73 = vcmask 1040384
    %v74 = vrot.slane %v41, 7
    %v75 = vrot.slane %v42, 7
    %v76 = vsel %vm73, %v74, %v75
    %v77 = vrot.slane %v43, 7
    %v78 = vrot.slane %v44, 7
    %v79 = vsel %vm73, %v77, %v78
    %v80 = vrot.slane %v45, 7
    %v81 = vrot.slane %v46, 7
    %v82 = vsel %vm73, %v80, %v81
    %v83 = vrot.slane %v47, 7
    %v84 = vrot.slane %v48, 7
    %v85 = vsel %vm73, %v83, %v84
    %v86 = vrot.slane %v49, 7
    %v87 = vrot.slane %v50, 7
    %v88 = vsel %vm73, %v86, %v87
    %v89 = vrot.slane %v51, 7
    %v90 = vrot.slane %v52, 7
    %v91 = vsel %vm73, %v89, %v90
    %v92 = vrot.slane %v53, 7
    %v93 = vrot.slane %v54, 7
    %v94 = vsel %vm73, %v92, %v93
    %v95 = vrot.slane %v55, 7
    %v96 = vrot.slane %v56, 7
    %v97 = vsel %vm73, %v95, %v96
    %v114 = vsub.f32 %v41, %v74
    %v115 = vsub.f32 %v42, %v76
    %v116 = vsub.f32 %v43, %v77
    %v117 = vsub.f32 %v44, %v79
    %v118 = vsub.f32 %v45, %v80
    %v119 = vsub.f32 %v46, %v82
    %v120 = vsub.f32 %v47, %v83
    %v121 = vsub.f32 %v48, %v85
    %v122 = vsub.f32 %v49, %v86
    %v123 = vsub.f32 %v50, %v88
    %v124 = vsub.f32 %v51, %v89
    %v125 = vsub.f32 %v52, %v91
    %v126 = vsub.f32 %v53, %v92
    %v127 = vsub.f32 %v54, %v94
    %v128 = vsub.f32 %v55, %v95
    %v129 = vsub.f32 %v56, %v97
    %130 = vrot.lane.b32.xlu0 %v41, 1
    %v131 = vpop.permute.xlu0 %130
    %132 = vrot.lane.b32.xlu0 %v42, 1
    %v133 = vpop.permute.xlu0 %132
    %134 = vrot.lane.b32.xlu0 %v43, 1
    %v135 = vpop.permute.xlu0 %134
    %136 = vrot.lane.b32.xlu0 %v44, 1
    %v137 = vpop.permute.xlu0 %136
    %138 = vrot.lane.b32.xlu0 %v45, 1
    %v139 = vpop.permute.xlu0 %138
    %140 = vrot.lane.b32.xlu0 %v46, 1
    %v141 = vpop.permute.xlu0 %140
    %142 = vrot.lane.b32.xlu0 %v47, 1
    %v143 = vpop.permute.xlu0 %142
    %144 = vrot.lane.b32.xlu0 %v48, 1
    %v145 = vpop.permute.xlu0 %144
    %146 = vrot.lane.b32.xlu0 %v49, 1
    %v147 = vpop.permute.xlu0 %146
    %148 = vrot.lane.b32.xlu0 %v50, 1
    %v149 = vpop.permute.xlu0 %148
    %150 = vrot.lane.b32.xlu0 %v51, 1
    %v151 = vpop.permute.xlu0 %150
    %152 = vrot.lane.b32.xlu0 %v52, 1
    %v153 = vpop.permute.xlu0 %152
    %154 = vrot.lane.b32.xlu0 %v53, 1
    %v155 = vpop.permute.xlu0 %154
    %156 = vrot.lane.b32.xlu0 %v54, 1
    %v157 = vpop.permute.xlu0 %156
    %158 = vrot.lane.b32.xlu0 %v55, 1
    %v159 = vpop.permute.xlu0 %158
    %160 = vrot.lane.b32.xlu0 %v56, 1
    %v161 = vpop.permute.xlu0 %160
    %v178 = vsub.f32 %v41, %v131
    %v179 = vsub.f32 %v42, %v133
    %v180 = vsub.f32 %v43, %v135
    %v181 = vsub.f32 %v44, %v137
    %v182 = vsub.f32 %v45, %v139
    %v183 = vsub.f32 %v46, %v141
    %v184 = vsub.f32 %v47, %v143
    %v185 = vsub.f32 %v48, %v145
    %v186 = vsub.f32 %v49, %v147
    %v187 = vsub.f32 %v50, %v149
    %v188 = vsub.f32 %v51, %v151
    %v189 = vsub.f32 %v52, %v153
    %v190 = vsub.f32 %v53, %v155
    %v191 = vsub.f32 %v54, %v157
    %v192 = vsub.f32 %v55, %v159
    %v193 = vsub.f32 %v56, %v161
    %v194 = vmul.f32 %v114, %v114
    %v195 = vmul.f32 %v115, %v115
    %v196 = vmul.f32 %v116, %v116
    %v197 = vmul.f32 %v117, %v117
    %v198 = vmul.f32 %v118, %v118
    %v199 = vmul.f32 %v119, %v119
    %v200 = vmul.f32 %v120, %v120
    %v201 = vmul.f32 %v121, %v121
    %v202 = vmul.f32 %v122, %v122
    %v203 = vmul.f32 %v123, %v123
    %v204 = vmul.f32 %v124, %v124
    %v205 = vmul.f32 %v125, %v125
    %v206 = vmul.f32 %v126, %v126
    %v207 = vmul.f32 %v127, %v127
    %v208 = vmul.f32 %v128, %v128
    %v209 = vmul.f32 %v129, %v129
    %vm210 = vcmask 130049
    %v211 = vsel %vm210, %v194, 0.0
    %v212 = vsel %vm210, %v196, 0.0
    %v213 = vadd.f32 %v211, %v212
    %v214 = vsel %vm210, %v198, 0.0
    %v215 = vadd.f32 %v213, %v214
    %v216 = vsel %vm210, %v200, 0.0
    %v217 = vadd.f32 %v215, %v216
    %v218 = vsel %vm210, %v202, 0.0
    %v219 = vadd.f32 %v217, %v218
    %v220 = vsel %vm210, %v204, 0.0
    %v221 = vadd.f32 %v219, %v220
    %v222 = vsel %vm210, %v206, 0.0
    %v223 = vadd.f32 %v221, %v222
    %v224 = vsel %vm210, %v208, 0.0
    %v225 = vadd.f32 %v223, %v224
    %vm226 = vcmask 130048
    %v227 = vsel %vm226, %v195, 0.0
    %v228 = vsel %vm226, %v197, 0.0
    %v229 = vadd.f32 %v227, %v228
    %v230 = vsel %vm226, %v199, 0.0
    %v231 = vadd.f32 %v229, %v230
    %v232 = vsel %vm226, %v201, 0.0
    %v233 = vadd.f32 %v231, %v232
    %v234 = vsel %vm226, %v203, 0.0
    %v235 = vadd.f32 %v233, %v234
    %v236 = vsel %vm226, %v205, 0.0
    %v237 = vadd.f32 %v235, %v236
    %v238 = vsel %vm226, %v207, 0.0
    %v239 = vadd.f32 %v237, %v238
    %v240 = vsel %vm226, %v209, 0.0
    %v241 = vadd.f32 %v239, %v240
    %vm244 = vcmask 1046528
    %v245 = vrot.slane %v225, 1
    %v246 = vrot.slane %v241, 1
    %v247 = vsel %vm244, %v245, %v246
    %v250 = vsel %vm226, %v247, 0.0
    %vm251 = vcmask 129024
    %v252 = vsel %vm251, %v246, 0.0
    %v253 = vadd.f32 %v250, %v252
    %v254 = vrot.slane %v253, 4
    %v255 = vadd.f32 %v253, %v254
    %v256 = vrot.slane %v255, 2
    %v257 = vadd.f32 %v255, %v256
    %v258 = vrot.slane %v257, 1
    %v259 = vadd.f32 %v257, %v258
    %v260 = vmul.f32 %v178, %v178
    %v261 = vmul.f32 %v179, %v179
    %v262 = vmul.f32 %v180, %v180
    %v263 = vmul.f32 %v181, %v181
    %v264 = vmul.f32 %v182, %v182
    %v265 = vmul.f32 %v183, %v183
    %v266 = vmul.f32 %v184, %v184
    %v267 = vmul.f32 %v185, %v185
    %v268 = vmul.f32 %v186, %v186
    %v269 = vmul.f32 %v187, %v187
    %v270 = vmul.f32 %v188, %v188
    %v271 = vmul.f32 %v189, %v189
    %v272 = vmul.f32 %v190, %v190
    %v273 = vmul.f32 %v191, %v191
    %v274 = vmul.f32 %v192, %v192
    %v275 = vmul.f32 %v193, %v193
    %vm276 = vcmask 130056
    %v277 = vsel %vm276, %v260, 0.0
    %v278 = vsel %vm276, %v262, 0.0
    %v279 = vadd.f32 %v277, %v278
    %v280 = vsel %vm276, %v264, 0.0
    %v281 = vadd.f32 %v279, %v280
    %v282 = vsel %vm276, %v266, 0.0
    %v283 = vadd.f32 %v281, %v282
    %v284 = vsel %vm276, %v268, 0.0
    %v285 = vadd.f32 %v283, %v284
    %v286 = vsel %vm276, %v270, 0.0
    %v287 = vadd.f32 %v285, %v286
    %v288 = vsel %vm276, %v272, 0.0
    %v289 = vadd.f32 %v287, %v288
    %v290 = vsel %vm276, %v274, 0.0
    %v291 = vadd.f32 %v289, %v290
    %v292 = vsel %vm276, %v261, 0.0
    %v293 = vsel %vm276, %v263, 0.0
    %v294 = vadd.f32 %v292, %v293
    %v295 = vsel %vm276, %v265, 0.0
    %v296 = vadd.f32 %v294, %v295
    %v297 = vsel %vm276, %v267, 0.0
    %v298 = vadd.f32 %v296, %v297
    %v299 = vsel %vm276, %v269, 0.0
    %v300 = vadd.f32 %v298, %v299
    %v301 = vsel %vm276, %v271, 0.0
    %v302 = vadd.f32 %v300, %v301
    %v303 = vsel %vm276, %v273, 0.0
    %v304 = vadd.f32 %v302, %v303
    %v305 = vsel %vm276, %v275, 0.0
    %v306 = vadd.f32 %v304, %v305
    %v307 = vsel %vm276, %v291, 0.0
    %v308 = vsel %vm276, %v306, 0.0
    %v309 = vadd.f32 %v307, %v308
    %v310 = vrot.slane %v309, 4
    %v311 = vadd.f32 %v309, %v310
    %v312 = vrot.slane %v311, 2
    %v313 = vadd.f32 %v311, %v312
    %v314 = vrot.slane %v313, 1
    %v315 = vadd.f32 %v313, %v314
    %v316 = vld [vmem:[#allocation2] sm:$0x1]
    %v317 = vadd.f32 %v316, %v259
    %vm318 = vcmask 122880
    %319 = vst.msk [vmem:[#allocation2] sm:$0x1] %vm318, %v317
    %v320 = vld [vmem:[#allocation3] sm:$0x1]
    %v323 = vunpack.c.l.s4 1966171168
    %v324 = vunpack.c.0.s8 %v323
    %v325 = vlaneseq
    %v326 = vshrl.u32 %v325, 7
    %v327 = vsub.s32 %v324, %v326
    %v328 = vrot.slane %v315, %v327
    %v330 = vunpack.c.l.s4 1966171168
    %v331 = vunpack.c.0.s8 %v330
    %v332 = vlaneseq
    %v333 = vshrl.u32 %v332, 7
    %v334 = vsub.s32 %v331, %v333
    %v335 = vrot.slane %v328, %v334
    %336 = vrot.lane.b32.xlu0 %v335, 127
    %v337 = vpop.permute.xlu0 %336
    %v339 = vadd.f32 %v320, %v337
    %vm340 = vcmask 114688
    %341 = vst.msk [vmem:[#allocation3] sm:$0x1] %vm340, %v339
    // Predicated region
    $region14: #{tv_loss.1} parent=1 // pred_check
      %p342 = pneg %p33
    $region15: #{tv_loss.1} parent=1 // pred_check_branch
      %344 = sbr.rel (%p342) target = $region17
    $region16: #{tv_loss.1} parent=1 // pred_region
      %v345 = vld [vmem:[#allocation2] sm:$0x1]
      %v346 = vsel %vm318, %v345, 0.0
      %347 = vadd.xlane.f32.xlu0 %v346
      %v348 = vpop.xlane.xlu0 %347
      %v349 = vrot.slane %v348, 4
      %v350 = vadd.f32 %v348, %v349
      %v351 = vrot.slane %v350, 2
      %v352 = vadd.f32 %v350, %v351
      %v353 = vrot.slane %v352, 1
      %v354 = vadd.f32 %v352, %v353
      %s355 = vtos %v354
      %v356 = vld [vmem:[#allocation3] sm:$0x1]
      %v357 = vsel %vm340, %v356, 0.0
      %358 = vadd.xlane.f32.xlu0 %v357
      %v359 = vpop.xlane.xlu0 %358
      %v360 = vrot.slane %v359, 4
      %v361 = vadd.f32 %v359, %v360
      %v362 = vrot.slane %v361, 2
      %v363 = vadd.f32 %v361, %v362
      %v364 = vrot.slane %v363, 1
      %v365 = vadd.f32 %v363, %v364
      %s366 = vtos %v365
      %v367 = vlaneseq
      %v368 = vand.u32 %v367, 127
      %vm369 = vcmp.eq.s32.totalorder %v368, 0
      %v370 = vstv %s355
      %v371 = vsel %vm369, %v370, 0.0
      %vm372 = vcmp.eq.s32.totalorder %v368, 1
      %v373 = vstv %s366
      %v374 = vsel %vm372, %v373, 0.0
      %v375 = vadd.f32 %v371, %v374
      %376 = vst [vmem:[%s1] sm:$0xff] %v375
    $region17: #{tv_loss.1} parent=1 // pred_fallthru
      _
    // Predicated region
    $region18: #{tv_loss.1} parent=1 // pred_check
      _
    $region19: #{tv_loss.1} parent=1 // pred_check_branch
      %378 = sbr.rel (0) target = $region21
    $region20: #{tv_loss.1} parent=1 // pred_region
      _
    $region21: #{tv_loss.1} parent=1 // pred_fallthru
      _
    // Predicated region
    $region22: #{tv_loss.1} parent=1 // pred_check
      _
    $region23: #{tv_loss.1} parent=1 // pred_check_branch
      %380 = sbr.rel (0) target = $region25
    $region24: #{tv_loss.1} parent=1 // pred_region
      _
    $region25: #{tv_loss.1} parent=1 // pred_fallthru
      _
    %381 = vsyncpa [#allocation5], 1

</llo_original>
